<compile_context>
chip_gen: v7x
topology: tpu7x:2x2x1
jax: 0.10.0
libtpu: 0.0.40
codegen_flags: <defaults>
</compile_context>

<pallas_src>
import jax
import jax.numpy as jnp
from jax.experimental import pallas as pl
from jax.experimental.pallas import tpu as pltpu

HIDDEN = 32            # hidden_size
N_ACTIONS = 4          # discrete action space size
EMB_ROWS = N_ACTIONS + 1
NOISE_COEFF = 0.1      # noise_coefficient

# ---- merged matmul-1/2 LHS lane layout ([B, 128]) ----------------------------
#   0:32  masked GRU hidden | 32:35 noisy goal (actor) | 35:38 clean goal
#   (critic) | 38:43 prev-action one-hot | 43 constant 1 (bias carrier)
_GA = 32
_GC = 35
_OH = 38
_ONE = 43
# ---- packed per-step input slab lane layout ([T, B, 128]) --------------------
#   0 dist | 1 theta | 2 mask | 3 prev_action | 4:7 N(0,1) noise | rest 0
# ---- packed output slab lane layout ([T, B, 128]) ----------------------------
#   0:32 actor features | 32:36 logits | 36:37 value | 64:96 new GRU hidden


def _gelu(x):
    # tanh-approximation GELU (torch nn.GELU(approximate="tanh")); differs from
    # the exact erf nn.GELU() by <~1e-3 abs -- acceptable for RL inference.
    c = 0.7978845608028654  # sqrt(2/pi)
    return 0.5 * x * (1.0 + jnp.tanh(c * (x + 0.044715 * x * x * x)))


def policy_kernel(step_ref, h0_ref, p_ref, out_ref, h_scr):
    f32 = jnp.float32
    H = HIDDEN
    B = step_ref.shape[0]
    t = pl.program_id(0)

    @pl.when(t == 0)
    def _():
        h_scr[...] = h0_ref[...]        # hidden at lanes 0:H, zeros elsewhere

    step = step_ref[...]                # [B, 128] packed per-step inputs
    dist = step[:, 0:1]
    theta = step[:, 1:2]
    mask = step[:, 2:3]
    prev = step[:, 3:4]
    n0, n1, n2 = step[:, 4:5], step[:, 5:6], step[:, 6:7]

    cos_t = jnp.cos(-theta)
    sin_t = jnp.sin(-theta)
    g0 = jnp.maximum(dist + n0 * (NOISE_COEFF * 10.0), 0.0)       # noisy dist
    g1 = jnp.clip(cos_t + n1 * NOISE_COEFF, -1.0, 1.0)
    g2 = jnp.clip(sin_t + n2 * NOISE_COEFF, -1.0, 1.0)

    # ---- merged matmul-1/2 LHS (iota column masks, pure VPU, no lane concat) --
    col = jax.lax.broadcasted_iota(jnp.int32, (B, 128), 1)
    obs = jnp.where(col == _GA + 0, g0,
          jnp.where(col == _GA + 1, g1,
          jnp.where(col == _GA + 2, g2,
          jnp.where(col == _GC + 0, dist,
          jnp.where(col == _GC + 1, cos_t,
          jnp.where(col == _GC + 2, sin_t, 0.0))))))
    idx = jnp.where(mask > 0.5, prev + 1.0, 0.0)                  # [B,1] float
    hot = (col.astype(f32) == idx + float(_OH)) | (col == _ONE)
    obs = jnp.where(hot, 1.0, obs)

    h_slab = h_scr[...] * mask          # [B,128]; hidden reset where done
    h = h_slab[:, 0:H]                  # [B,H] masked hidden (exact f32 carry)
    lhs12 = obs + h_slab                # disjoint lane ranges -> plain VPU add

    w12 = p_ref[:, 0:256]               # [128,256] gi(r|z|n) | latent_c | gh(r|z|n)
    w3 = p_ref[:, 256:384]              # [128,128] feat | logits | value | I(h_new)

    # ---- matmul 1+2: GRU input proj + critic latent + GRU hidden proj --------
    mm = jnp.dot(lhs12, w12, preferred_element_type=f32)          # [B,256]
    r = jax.nn.sigmoid(mm[:, 0:H] + mm[:, 4 * H:5 * H])
    z = jax.nn.sigmoid(mm[:, H:2 * H] + mm[:, 5 * H:6 * H])
    n = jnp.tanh(mm[:, 2 * H:3 * H] + r * mm[:, 6 * H:7 * H])
    h_new = (1.0 - z) * n + z * h                                 # [B,H]
    latent_c = mm[:, 3 * H:4 * H]                                 # critic latent

    h_scr[:, 0:H] = h_new               # carry exact f32 hidden to next step

    # ---- matmul 3: head / logits / value / hidden writeback / biases ---------
    ones = (jax.lax.broadcasted_iota(jnp.int32, (B, H), 1) == 0).astype(f32)
    lhs3 = jnp.concatenate([_gelu(h_new), _gelu(latent_c), h_new, ones], axis=1)
    out_ref[...] = jnp.dot(lhs3, w3, preferred_element_type=f32)  # one unmasked vst


@jax.jit
def pointnav_policy_forward(goal, prev_actions, masks, hidden, noise, param_slab):
    """Fused actor/critic forward over a T-step sequence.

    goal:[T,B,2](dist,theta)  prev_actions:[T,B,1]i32  masks:[T,B,1]f32
    hidden:[B,H] initial GRU state  noise:[T,B,3] N(0,1)  param_slab:[128,384]
    Returns (features[T,B,H], hiddens[T,B,H], values[T,B,1], logits[T,B,A]).
    """
    T, B = goal.shape[0], goal.shape[1]

    # pack the 4 per-step runtime inputs into one lane-dense slab (1 DMA/step)
    steps = jnp.zeros((T, B, 128), jnp.float32)
    steps = steps.at[..., 0:2].set(goal)
    steps = steps.at[..., 2:3].set(masks)
    steps = steps.at[..., 3:4].set(prev_actions.astype(jnp.float32))
    steps = steps.at[..., 4:7].set(noise)
    h0 = jnp.zeros((B, 128), jnp.float32).at[:, 0:HIDDEN].set(hidden)

    out = pl.pallas_call(
        policy_kernel,
        out_shape=jax.ShapeDtypeStruct((T, B, 128), jnp.float32),
        grid_spec=pltpu.PrefetchScalarGridSpec(
            num_scalar_prefetch=0,
            grid=(T,),
            in_specs=[
                pl.BlockSpec((None, B, 128), lambda t: (t, 0, 0)),   # per-step stream
                pl.BlockSpec((B, 128), lambda t: (0, 0)),            # resident h0
                pl.BlockSpec((128, 384), lambda t: (0, 0)),          # resident weights
            ],
            out_specs=pl.BlockSpec((None, B, 128), lambda t: (t, 0, 0)),
            scratch_shapes=[pltpu.VMEM((B, 128), jnp.float32)],      # carried hidden
        ),
        compiler_params=pltpu.CompilerParams(
            dimension_semantics=("arbitrary",)),                     # sequential carry
    )(steps, h0, param_slab)

    feat = out[..., 0:HIDDEN]                                   # actor features
    logits = out[..., HIDDEN:HIDDEN + N_ACTIONS]                # categorical logits
    value = out[..., HIDDEN + N_ACTIONS:HIDDEN + N_ACTIONS + 1]  # critic value
    hiddens = out[..., 2 * HIDDEN:3 * HIDDEN]                   # per-step GRU hidden
    return feat, hiddens, value, logits


# -------------------- host-side parameter init / offline folding --------------------
def init_params(key):
    ks = jax.random.split(key, 12)

    def lin(k, fan_in, fan_out):
        bound = 1.0 / float(fan_in) ** 0.5
        kw, kb = jax.random.split(k)
        w = jax.random.uniform(kw, (fan_in, fan_out), jnp.float32, -bound, bound)
        b = jax.random.uniform(kb, (1, fan_out), jnp.float32, -bound, bound)
        return w, b

    p = {}
    # prev_action_embedding.weight.data.uniform_(-0.003, 0.003)
    p["emb_a"] = jax.random.uniform(ks[0], (EMB_ROWS, 32), jnp.float32, -0.003, 0.003)
    p["emb_c"] = jax.random.uniform(ks[1], (EMB_ROWS, 32), jnp.float32, -0.003, 0.003)
    p["tgt_wa"], p["tgt_ba"] = lin(ks[2], 3, 32)
    p["tgt_wc"], p["tgt_bc"] = lin(ks[3], 3, 32)
    rnn_in = 64
    gb = 1.0 / float(HIDDEN) ** 0.5
    p["w_ih"] = jax.random.uniform(ks[4], (rnn_in, 3 * HIDDEN), jnp.float32, -gb, gb)
    p["w_hh"] = jax.random.uniform(ks[5], (HIDDEN, 3 * HIDDEN), jnp.float32, -gb, gb)
    p["b_ih"] = jax.random.uniform(ks[6], (1, 3 * HIDDEN), jnp.float32, -gb, gb)
    p["b_hh"] = jax.random.uniform(ks[7], (1, 3 * HIDDEN), jnp.float32, -gb, gb)
    p["head_w"], p["head_b"] = lin(ks[8], HIDDEN, HIDDEN)
    p["mix_w"], p["mix_b"] = lin(ks[9], rnn_in, HIDDEN)
    p["fc_w"], p["fc_b"] = lin(ks[10], HIDDEN, 1)
    p["dist_w"], p["dist_b"] = lin(ks[11], HIDDEN, N_ACTIONS)
    return p


def pack_params(p):
    """Fold adjacent affine layers offline and pack into one [128,384] f32 slab.

    cols 0:256  (W12, merged GRU-input / critic-latent / GRU-hidden projection)
      rows  0:32  (hidden lanes)  -> cols 128:224 = w_hh (r|z|n)
      rows 32:35  (noisy goal)    -> cols   0:96  = tgt_wa @ w_ih[:32]
      rows 35:38  (clean goal)    -> cols  96:128 = tgt_wc @ mix_w[:32]
      rows 38:43  (one-hot)       -> cols 0:96 = emb_a @ w_ih[32:], 96:128 = emb_c @ mix_w[32:]
      row  43     (constant 1)    -> folded biases (b_ih + b_hh(r,z) | mix_b | b_hn on gh_n)
    cols 256:384 (W3: head | logits | value | hidden passthrough | biases)
      rows  0:32 gelu(h_new) -> head_w (0:32), head_w@dist_w (32:36)
      rows 32:64 gelu(lat_c) -> fc_w (36:37)
      rows 64:96 h_new       -> I_32 at cols 64:96  (hidden writeback)
      row  96    constant 1  -> head_b | head_b@dist_w+dist_b | fc_b
    """
    f32 = jnp.float32
    H = HIDDEN

    W12 = jnp.zeros((128, 256), f32)
    W12 = W12.at[0:H, 128:224].set(p["w_hh"])
    W12 = W12.at[_GA:_GA + 3, 0:96].set(p["tgt_wa"] @ p["w_ih"][:32, :])
    W12 = W12.at[_GC:_GC + 3, 96:128].set(p["tgt_wc"] @ p["mix_w"][:32, :])
    W12 = W12.at[_OH:_OH + EMB_ROWS, 0:96].set(p["emb_a"] @ p["w_ih"][32:, :])
    W12 = W12.at[_OH:_OH + EMB_ROWS, 96:128].set(p["emb_c"] @ p["mix_w"][32:, :])
    b_gi = p["tgt_ba"] @ p["w_ih"][:32, :] + p["b_ih"]          # [1,96]
    b_gi = b_gi.at[:, :2 * H].add(p["b_hh"][:, :2 * H])         # fold b_hh for r, z
    b_mx = p["tgt_bc"] @ p["mix_w"][:32, :] + p["mix_b"]        # [1,32]
    W12 = W12.at[_ONE, 0:96].set(b_gi[0])
    W12 = W12.at[_ONE, 96:128].set(b_mx[0])
    W12 = W12.at[_ONE, 192:224].set(p["b_hh"][0, 2 * H:])       # b_hn stays on gh_n

    W3 = jnp.zeros((128, 128), f32)
    W3 = W3.at[0:H, 0:H].set(p["head_w"])
    W3 = W3.at[0:H, H:H + N_ACTIONS].set(p["head_w"] @ p["dist_w"])
    W3 = W3.at[H:2 * H, H + N_ACTIONS:H + N_ACTIONS + 1].set(p["fc_w"])
    W3 = W3.at[2 * H:3 * H, 2 * H:3 * H].set(jnp.eye(H, dtype=f32))
    W3 = W3.at[3 * H, 0:H].set(p["head_b"][0])
    W3 = W3.at[3 * H, H:H + N_ACTIONS].set((p["head_b"] @ p["dist_w"] + p["dist_b"])[0])
    W3 = W3.at[3 * H, H + N_ACTIONS:H + N_ACTIONS + 1].set(p["fc_b"][0])

    # guard the hidden-writeback region (perf-review correctness concern #2):
    # cols 2H:3H of W3 must be exactly I_32 on rows 2H:3H and zero everywhere else.
    hid_cols = W3[:, 2 * H:3 * H]
    assert float(jnp.abs(hid_cols.at[2 * H:3 * H, :].set(0.0)).max()) == 0.0
    assert bool(jnp.all(hid_cols[2 * H:3 * H, :] == jnp.eye(H, dtype=f32)))

    return jnp.concatenate([W12, W3], axis=1)                   # [128, 384]


# -------------------- unfused pure-JAX reference (correctness guard) --------------------
def reference_forward(goal, prev_actions, masks, hidden, noise, p):
    H = HIDDEN
    dist = goal[:, 0:1]
    theta = goal[:, 1:2]
    cos_t = jnp.cos(-theta)
    sin_t = jnp.sin(-theta)
    g0 = jnp.maximum(dist + noise[:, 0:1] * (NOISE_COEFF * 10.0), 0.0)
    g1 = jnp.clip(cos_t + noise[:, 1:2] * NOISE_COEFF, -1.0, 1.0)
    g2 = jnp.clip(sin_t + noise[:, 2:3] * NOISE_COEFF, -1.0, 1.0)
    goal_a = jnp.concatenate([g0, g1, g2], axis=1)
    goal_c = jnp.concatenate([dist, cos_t, sin_t], axis=1)
    idx = jnp.where(masks > 0.5, prev_actions + 1, jnp.zeros_like(prev_actions))
    onehot = (idx == jnp.arange(EMB_ROWS)[None, :]).astype(jnp.float32)
    tgt_a = goal_a @ p["tgt_wa"] + p["tgt_ba"]
    tgt_c = goal_c @ p["tgt_wc"] + p["tgt_bc"]
    x_a = jnp.concatenate([tgt_a, onehot @ p["emb_a"]], axis=1)
    x_c = jnp.concatenate([tgt_c, onehot @ p["emb_c"]], axis=1)
    h = hidden * masks
    gi = x_a @ p["w_ih"] + p["b_ih"]
    gh = h @ p["w_hh"] + p["b_hh"]
    r = jax.nn.sigmoid(gi[:, :H] + gh[:, :H])
    z = jax.nn.sigmoid(gi[:, H:2 * H] + gh[:, H:2 * H])
    n = jnp.tanh(gi[:, 2 * H:] + r * gh[:, 2 * H:])
    h_new = (1.0 - z) * n + z * h
    feat = _gelu(h_new) @ p["head_w"] + p["head_b"]
    logits = feat @ p["dist_w"] + p["dist_b"]
    latent_c = x_c @ p["mix_w"] + p["mix_b"]
    value = _gelu(latent_c) @ p["fc_w"] + p["fc_b"]
    return feat, h_new, value, logits


def reference_rollout(goal, prev_actions, masks, hidden0, noise, p):
    feats, hids, vals, logs = [], [], [], []
    h = hidden0
    for t in range(goal.shape[0]):
        f, h, v, l = reference_forward(goal[t], prev_actions[t], masks[t], h, noise[t], p)
        feats.append(f); hids.append(h); vals.append(v); logs.append(l)
    return jnp.stack(feats), jnp.stack(hids), jnp.stack(vals), jnp.stack(logs)


if __name__ == "__main__":
    key = jax.random.PRNGKey(0)
    kp, kg, ka, km, kh, kn = jax.random.split(key, 6)
    T, B = 8, 8

    params = init_params(kp)
    param_slab = pack_params(params)

    goal = jax.random.uniform(kg, (T, B, 2), jnp.float32, 0.0, 2.5)        # [dist, theta]
    prev_actions = jax.random.randint(ka, (T, B, 1), 0, N_ACTIONS, dtype=jnp.int32)
    masks = (jax.random.uniform(km, (T, B, 1)) > 0.3).astype(jnp.float32)  # not-done mask
    hidden0 = jax.random.normal(kh, (B, HIDDEN), jnp.float32)              # initial GRU state
    # torch.randn_like noise (stateful torch RNG) is reproduced as deterministic
    # standard-normal samples streamed in the packed per-step slab.
    noise = jax.random.normal(kn, (T, B, 3), jnp.float32)

    feat, hiddens, value, logits = jax.block_until_ready(
        pointnav_policy_forward(goal, prev_actions, masks, hidden0, noise, param_slab)
    )

    # guard the weight folding / slab layout against the unfused reference.
    # Tolerance covers folding re-association, default (reduced-precision) MXU
    # matmuls, and error compounding through the hidden state over T steps.
    f_r, h_r, v_r, l_r = reference_rollout(goal, prev_actions, masks, hidden0, noise, params)
    for name, got, ref in (("feat", feat, f_r), ("hidden", hiddens, h_r),
                           ("value", value, v_r), ("logits", logits, l_r)):
        ok = bool(jnp.allclose(got, ref, atol=3e-2, rtol=3e-2))
        assert ok, (name, float(jnp.max(jnp.abs(got - ref))))

    assert feat.shape == (T, B, HIDDEN) and hiddens.shape == (T, B, HIDDEN)
    assert value.shape == (T, B, 1) and logits.shape == (T, B, N_ACTIONS)
    print("KERNEL_OK")
</pallas_src>

<mosaic_0001>
module attributes {stable_mosaic.version = 11 : i64} {
  func.func @policy_kernel(%arg0: i32, %arg1: memref<1x8x128xf32, #tpu.memory_space<vmem>>, %arg2: memref<8x128xf32, #tpu.memory_space<vmem>>, %arg3: memref<128x384xf32, #tpu.memory_space<vmem>>, %arg4: memref<1x8x128xf32, #tpu.memory_space<vmem>>, %arg5: memref<8x128xf32, #tpu.memory_space<vmem>>) attributes {dimension_semantics = [#tpu.dimension_semantics<arbitrary>], iteration_bounds = array<i64: 8>, scalar_prefetch = 0 : i64, scratch_operands = 1 : i64, tpu.core_type = #tpu.core_type<tc>, window_params = [{transform_indices = @transform_0, window_bounds = array<i64: 1, 8, 128>}, {pipeline_mode = #tpu.pipeline_mode<synchronous>, transform_indices = @transform_1, window_bounds = array<i64: 8, 128>}, {pipeline_mode = #tpu.pipeline_mode<synchronous>, transform_indices = @transform_2, window_bounds = array<i64: 128, 384>}, {transform_indices = @transform_3, window_bounds = array<i64: 1, 8, 128>}]} {
    %c0_i32 = arith.constant 0 : i32
    %0 = arith.cmpi eq, %arg0, %c0_i32 : i32
    %1 = arith.extui %0 : i1 to i32
    %c0_i32_0 = arith.constant 0 : i32
    %2 = arith.cmpi ne, %1, %c0_i32_0 : i32
    scf.if %2 {
      %c0_42 = arith.constant 0 : index
      %c0_43 = arith.constant 0 : index
      %157 = vector.load %arg2[%c0_42, %c0_43] : memref<8x128xf32, #tpu.memory_space<vmem>>, vector<8x128xf32>
      %c0_44 = arith.constant 0 : index
      %c0_45 = arith.constant 0 : index
      %158 = vector.load %arg5[%c0_44, %c0_45] : memref<8x128xf32, #tpu.memory_space<vmem>>, vector<8x128xf32>
      tpu.vector_store %arg5[%c0_44, %c0_45], %157 {strides = array<i32>} : memref<8x128xf32, #tpu.memory_space<vmem>>, vector<8x128xf32>,
    } else {
    }
    %c0 = arith.constant 0 : index
    %c0_1 = arith.constant 0 : index
    %c0_2 = arith.constant 0 : index
    %3 = vector.load %arg1[%c0, %c0_1, %c0_2] : memref<1x8x128xf32, #tpu.memory_space<vmem>>, vector<1x8x128xf32>
    %4 = vector.shape_cast %3 : vector<1x8x128xf32> to vector<8x128xf32>
    %5 = vector.extract_strided_slice %4 {offsets = [0, 0], sizes = [8, 1], strides = [1, 1]} : vector<8x128xf32> to vector<8x1xf32>
    %6 = vector.extract_strided_slice %4 {offsets = [0, 1], sizes = [8, 1], strides = [1, 1]} : vector<8x128xf32> to vector<8x1xf32>
    %7 = vector.extract_strided_slice %4 {offsets = [0, 2], sizes = [8, 1], strides = [1, 1]} : vector<8x128xf32> to vector<8x1xf32>
    %8 = vector.extract_strided_slice %4 {offsets = [0, 3], sizes = [8, 1], strides = [1, 1]} : vector<8x128xf32> to vector<8x1xf32>
    %9 = vector.extract_strided_slice %4 {offsets = [0, 4], sizes = [8, 1], strides = [1, 1]} : vector<8x128xf32> to vector<8x1xf32>
    %10 = vector.extract_strided_slice %4 {offsets = [0, 5], sizes = [8, 1], strides = [1, 1]} : vector<8x128xf32> to vector<8x1xf32>
    %11 = vector.extract_strided_slice %4 {offsets = [0, 6], sizes = [8, 1], strides = [1, 1]} : vector<8x128xf32> to vector<8x1xf32>
    %cst = arith.constant 0.000000e+00 : f32
    %12 = vector.broadcast %cst : f32 to vector<8x1xf32>
    %13 = arith.subf %12, %6 : vector<8x1xf32>
    %14 = math.cos %13 : vector<8x1xf32>
    %cst_3 = arith.constant 0.000000e+00 : f32
    %15 = vector.broadcast %cst_3 : f32 to vector<8x1xf32>
    %16 = arith.subf %15, %6 : vector<8x1xf32>
    %17 = math.sin %16 : vector<8x1xf32>
    %cst_4 = arith.constant 1.000000e+00 : f32
    %18 = vector.broadcast %cst_4 : f32 to vector<8x1xf32>
    %19 = arith.mulf %9, %18 : vector<8x1xf32>
    %20 = arith.addf %5, %19 : vector<8x1xf32>
    %cst_5 = arith.constant 0.000000e+00 : f32
    %21 = vector.broadcast %cst_5 : f32 to vector<8x1xf32>
    %22 = arith.maximumf %20, %21 : vector<8x1xf32>
    %cst_6 = arith.constant 1.000000e-01 : f32
    %23 = vector.broadcast %cst_6 : f32 to vector<8x1xf32>
    %24 = arith.mulf %10, %23 : vector<8x1xf32>
    %25 = arith.addf %14, %24 : vector<8x1xf32>
    %cst_7 = arith.constant -1.000000e+00 : f32
    %cst_8 = arith.constant 1.000000e+00 : f32
    %26 = vector.broadcast %cst_7 : f32 to vector<8x1xf32>
    %27 = arith.maximumf %26, %25 : vector<8x1xf32>
    %28 = vector.broadcast %cst_8 : f32 to vector<8x1xf32>
    %29 = arith.minimumf %28, %27 : vector<8x1xf32>
    %cst_9 = arith.constant 1.000000e-01 : f32
    %30 = vector.broadcast %cst_9 : f32 to vector<8x1xf32>
    %31 = arith.mulf %11, %30 : vector<8x1xf32>
    %32 = arith.addf %17, %31 : vector<8x1xf32>
    %cst_10 = arith.constant -1.000000e+00 : f32
    %cst_11 = arith.constant 1.000000e+00 : f32
    %33 = vector.broadcast %cst_10 : f32 to vector<8x1xf32>
    %34 = arith.maximumf %33, %32 : vector<8x1xf32>
    %35 = vector.broadcast %cst_11 : f32 to vector<8x1xf32>
    %36 = arith.minimumf %35, %34 : vector<8x1xf32>
    %37 = tpu.iota {dimensions = array<i32: 1>} : vector<8x128xi32>
    %c32_i32 = arith.constant 32 : i32
    %38 = vector.broadcast %c32_i32 : i32 to vector<8x128xi32>
    %39 = arith.cmpi eq, %37, %38 : vector<8x128xi32>
    %c33_i32 = arith.constant 33 : i32
    %40 = vector.broadcast %c33_i32 : i32 to vector<8x128xi32>
    %41 = arith.cmpi eq, %37, %40 : vector<8x128xi32>
    %c34_i32 = arith.constant 34 : i32
    %42 = vector.broadcast %c34_i32 : i32 to vector<8x128xi32>
    %43 = arith.cmpi eq, %37, %42 : vector<8x128xi32>
    %c35_i32 = arith.constant 35 : i32
    %44 = vector.broadcast %c35_i32 : i32 to vector<8x128xi32>
    %45 = arith.cmpi eq, %37, %44 : vector<8x128xi32>
    %c36_i32 = arith.constant 36 : i32
    %46 = vector.broadcast %c36_i32 : i32 to vector<8x128xi32>
    %47 = arith.cmpi eq, %37, %46 : vector<8x128xi32>
    %c37_i32 = arith.constant 37 : i32
    %48 = vector.broadcast %c37_i32 : i32 to vector<8x128xi32>
    %49 = arith.cmpi eq, %37, %48 : vector<8x128xi32>
    %cst_12 = arith.constant 0.000000e+00 : f32
    %50 = vector.shape_cast %17 : vector<8x1xf32> to vector<8x1xf32>
    %51 = vector.broadcast %50 : vector<8x1xf32> to vector<8x128xf32>
    %52 = vector.broadcast %cst_12 : f32 to vector<8x128xf32>
    %53 = arith.select %49, %51, %52 : vector<8x128xi1>, vector<8x128xf32>
    %54 = vector.shape_cast %14 : vector<8x1xf32> to vector<8x1xf32>
    %55 = vector.broadcast %54 : vector<8x1xf32> to vector<8x128xf32>
    %56 = arith.select %47, %55, %53 : vector<8x128xi1>, vector<8x128xf32>
    %57 = vector.shape_cast %5 : vector<8x1xf32> to vector<8x1xf32>
    %58 = vector.broadcast %57 : vector<8x1xf32> to vector<8x128xf32>
    %59 = arith.select %45, %58, %56 : vector<8x128xi1>, vector<8x128xf32>
    %60 = vector.shape_cast %36 : vector<8x1xf32> to vector<8x1xf32>
    %61 = vector.broadcast %60 : vector<8x1xf32> to vector<8x128xf32>
    %62 = arith.select %43, %61, %59 : vector<8x128xi1>, vector<8x128xf32>
    %63 = vector.shape_cast %29 : vector<8x1xf32> to vector<8x1xf32>
    %64 = vector.broadcast %63 : vector<8x1xf32> to vector<8x128xf32>
    %65 = arith.select %41, %64, %62 : vector<8x128xi1>, vector<8x128xf32>
    %66 = vector.shape_cast %22 : vector<8x1xf32> to vector<8x1xf32>
    %67 = vector.broadcast %66 : vector<8x1xf32> to vector<8x128xf32>
    %68 = arith.select %39, %67, %65 : vector<8x128xi1>, vector<8x128xf32>
    %cst_13 = arith.constant 5.000000e-01 : f32
    %69 = vector.broadcast %cst_13 : f32 to vector<8x1xf32>
    %70 = arith.cmpf ogt, %7, %69 : vector<8x1xf32>
    %cst_14 = arith.constant 1.000000e+00 : f32
    %71 = vector.broadcast %cst_14 : f32 to vector<8x1xf32>
    %72 = arith.addf %8, %71 : vector<8x1xf32>
    %cst_15 = arith.constant 0.000000e+00 : f32
    %73 = vector.broadcast %cst_15 : f32 to vector<8x1xf32>
    %74 = arith.select %70, %72, %73 : vector<8x1xi1>, vector<8x1xf32>
    %75 = arith.sitofp %37 : vector<8x128xi32> to vector<8x128xf32>
    %cst_16 = arith.constant 3.800000e+01 : f32
    %76 = vector.broadcast %cst_16 : f32 to vector<8x1xf32>
    %77 = arith.addf %74, %76 : vector<8x1xf32>
    %78 = vector.broadcast %77 : vector<8x1xf32> to vector<8x128xf32>
    %79 = arith.cmpf oeq, %75, %78 : vector<8x128xf32>
    %c43_i32 = arith.constant 43 : i32
    %80 = vector.broadcast %c43_i32 : i32 to vector<8x128xi32>
    %81 = arith.cmpi eq, %37, %80 : vector<8x128xi32>
    %82 = arith.ori %79, %81 : vector<8x128xi1>
    %cst_17 = arith.constant 1.000000e+00 : f32
    %83 = vector.broadcast %cst_17 : f32 to vector<8x128xf32>
    %84 = arith.select %82, %83, %68 : vector<8x128xi1>, vector<8x128xf32>
    %c0_18 = arith.constant 0 : index
    %c0_19 = arith.constant 0 : index
    %85 = vector.load %arg5[%c0_18, %c0_19] : memref<8x128xf32, #tpu.memory_space<vmem>>, vector<8x128xf32>
    %86 = vector.broadcast %7 : vector<8x1xf32> to vector<8x128xf32>
    %87 = arith.mulf %85, %86 : vector<8x128xf32>
    %88 = vector.extract_strided_slice %87 {offsets = [0, 0], sizes = [8, 32], strides = [1, 1]} : vector<8x128xf32> to vector<8x32xf32>
    %89 = arith.addf %84, %87 : vector<8x128xf32>
    %c0_20 = arith.constant 0 : index
    %c0_21 = arith.constant 0 : index
    %90 = vector.load %arg3[%c0_20, %c0_21] : memref<128x384xf32, #tpu.memory_space<vmem>>, vector<128x256xf32>
    %c0_22 = arith.constant 0 : index
    %c256 = arith.constant 256 : index
    %91 = vector.load %arg3[%c0_22, %c256] : memref<128x384xf32, #tpu.memory_space<vmem>>, vector<128x128xf32>
    %cst_23 = arith.constant dense<0.000000e+00> : vector<8x256xf32>
    %92 = tpu.matmul %89, %90, %cst_23 {dimension_numbers = #tpu.dot_dimension_numbers<[1], [0], [0], [1], [0, 0, 1, 1], [], []>} : vector<8x128xf32>, vector<128x256xf32>, vector<8x256xf32> -> vector<8x256xf32>
    %93 = vector.extract_strided_slice %92 {offsets = [0, 0], sizes = [8, 32], strides = [1, 1]} : vector<8x256xf32> to vector<8x32xf32>
    %94 = vector.extract_strided_slice %92 {offsets = [0, 128], sizes = [8, 32], strides = [1, 1]} : vector<8x256xf32> to vector<8x32xf32>
    %95 = arith.addf %93, %94 : vector<8x32xf32>
    %96 = arith.negf %95 : vector<8x32xf32>
    %97 = math.exp %96 : vector<8x32xf32>
    %cst_24 = arith.constant 1.000000e+00 : f32
    %98 = vector.broadcast %cst_24 : f32 to vector<8x32xf32>
    %99 = arith.addf %98, %97 : vector<8x32xf32>
    %100 = arith.divf %98, %99 : vector<8x32xf32>
    %101 = vector.extract_strided_slice %92 {offsets = [0, 32], sizes = [8, 32], strides = [1, 1]} : vector<8x256xf32> to vector<8x32xf32>
    %102 = vector.extract_strided_slice %92 {offsets = [0, 160], sizes = [8, 32], strides = [1, 1]} : vector<8x256xf32> to vector<8x32xf32>
    %103 = arith.addf %101, %102 : vector<8x32xf32>
    %104 = arith.negf %103 : vector<8x32xf32>
    %105 = math.exp %104 : vector<8x32xf32>
    %cst_25 = arith.constant 1.000000e+00 : f32
    %106 = vector.broadcast %cst_25 : f32 to vector<8x32xf32>
    %107 = arith.addf %106, %105 : vector<8x32xf32>
    %108 = arith.divf %106, %107 : vector<8x32xf32>
    %109 = vector.extract_strided_slice %92 {offsets = [0, 64], sizes = [8, 32], strides = [1, 1]} : vector<8x256xf32> to vector<8x32xf32>
    %110 = vector.extract_strided_slice %92 {offsets = [0, 192], sizes = [8, 32], strides = [1, 1]} : vector<8x256xf32> to vector<8x32xf32>
    %111 = arith.mulf %100, %110 : vector<8x32xf32>
    %112 = arith.addf %109, %111 : vector<8x32xf32>
    %113 = math.tanh %112 : vector<8x32xf32>
    %cst_26 = arith.constant 1.000000e+00 : f32
    %114 = vector.broadcast %cst_26 : f32 to vector<8x32xf32>
    %115 = arith.subf %114, %108 : vector<8x32xf32>
    %116 = arith.mulf %115, %113 : vector<8x32xf32>
    %117 = arith.mulf %108, %88 : vector<8x32xf32>
    %118 = arith.addf %116, %117 : vector<8x32xf32>
    %119 = vector.extract_strided_slice %92 {offsets = [0, 96], sizes = [8, 32], strides = [1, 1]} : vector<8x256xf32> to vector<8x32xf32>
    %c0_27 = arith.constant 0 : index
    %c0_28 = arith.constant 0 : index
    %120 = vector.load %arg5[%c0_27, %c0_28] : memref<8x128xf32, #tpu.memory_space<vmem>>, vector<8x32xf32>
    tpu.vector_store %arg5[%c0_27, %c0_28], %118 {strides = array<i32>} : memref<8x128xf32, #tpu.memory_space<vmem>>, vector<8x32xf32>,
    %121 = tpu.iota {dimensions = array<i32: 1>} : vector<8x32xi32>
    %c0_i32_29 = arith.constant 0 : i32
    %122 = vector.broadcast %c0_i32_29 : i32 to vector<8x32xi32>
    %123 = arith.cmpi eq, %121, %122 : vector<8x32xi32>
    %124 = arith.extui %123 : vector<8x32xi1> to vector<8x32xi32>
    %125 = arith.sitofp %124 : vector<8x32xi32> to vector<8x32xf32>
    %cst_30 = arith.constant 5.000000e-01 : f32
    %126 = vector.broadcast %cst_30 : f32 to vector<8x32xf32>
    %127 = arith.mulf %126, %118 : vector<8x32xf32>
    %cst_31 = arith.constant 4.471500e-02 : f32
    %128 = vector.broadcast %cst_31 : f32 to vector<8x32xf32>
    %129 = arith.mulf %128, %118 : vector<8x32xf32>
    %130 = arith.mulf %129, %118 : vector<8x32xf32>
    %131 = arith.mulf %130, %118 : vector<8x32xf32>
    %132 = arith.addf %118, %131 : vector<8x32xf32>
    %cst_32 = arith.constant 0.797884583 : f32
    %133 = vector.broadcast %cst_32 : f32 to vector<8x32xf32>
    %134 = arith.mulf %133, %132 : vector<8x32xf32>
    %135 = math.tanh %134 : vector<8x32xf32>
    %cst_33 = arith.constant 1.000000e+00 : f32
    %136 = vector.broadcast %cst_33 : f32 to vector<8x32xf32>
    %137 = arith.addf %136, %135 : vector<8x32xf32>
    %138 = arith.mulf %127, %137 : vector<8x32xf32>
    %cst_34 = arith.constant 5.000000e-01 : f32
    %139 = vector.broadcast %cst_34 : f32 to vector<8x32xf32>
    %140 = arith.mulf %139, %119 : vector<8x32xf32>
    %cst_35 = arith.constant 4.471500e-02 : f32
    %141 = vector.broadcast %cst_35 : f32 to vector<8x32xf32>
    %142 = arith.mulf %141, %119 : vector<8x32xf32>
    %143 = arith.mulf %142, %119 : vector<8x32xf32>
    %144 = arith.mulf %143, %119 : vector<8x32xf32>
    %145 = arith.addf %119, %144 : vector<8x32xf32>
    %cst_36 = arith.constant 0.797884583 : f32
    %146 = vector.broadcast %cst_36 : f32 to vector<8x32xf32>
    %147 = arith.mulf %146, %145 : vector<8x32xf32>
    %148 = math.tanh %147 : vector<8x32xf32>
    %cst_37 = arith.constant 1.000000e+00 : f32
    %149 = vector.broadcast %cst_37 : f32 to vector<8x32xf32>
    %150 = arith.addf %149, %148 : vector<8x32xf32>
    %151 = arith.mulf %140, %150 : vector<8x32xf32>
    %152 = tpu.concatenate %138, %151, %118, %125 in 1 : vector<8x32xf32>, vector<8x32xf32>, vector<8x32xf32>, vector<8x32xf32> -> vector<8x128xf32>
    %cst_38 = arith.constant dense<0.000000e+00> : vector<8x128xf32>
    %153 = tpu.matmul %152, %91, %cst_38 {dimension_numbers = #tpu.dot_dimension_numbers<[1], [0], [0], [1], [0, 0, 1, 1], [], []>} : vector<8x128xf32>, vector<128x128xf32>, vector<8x128xf32> -> vector<8x128xf32>
    %c0_39 = arith.constant 0 : index
    %c0_40 = arith.constant 0 : index
    %c0_41 = arith.constant 0 : index
    %154 = vector.load %arg4[%c0_39, %c0_40, %c0_41] : memref<1x8x128xf32, #tpu.memory_space<vmem>>, vector<1x8x128xf32>
    %155 = vector.shape_cast %154 : vector<1x8x128xf32> to vector<8x128xf32>
    %156 = vector.shape_cast %153 : vector<8x128xf32> to vector<1x8x128xf32>
    tpu.vector_store %arg4[%c0_39, %c0_40, %c0_41], %156 {strides = array<i32>} : memref<1x8x128xf32, #tpu.memory_space<vmem>>, vector<1x8x128xf32>,
    return
  }
  func.func @transform_0(%arg0: i32) -> (i32, i32, i32) {
    %c0_i32 = arith.constant 0 : i32
    %c0_i32_0 = arith.constant 0 : i32
    %c0_i32_1 = arith.constant 0 : i32
    return %arg0, %c0_i32, %c0_i32_0 : i32, i32, i32
  }
  func.func @transform_1(%arg0: i32) -> (i32, i32) {
    %c0_i32 = arith.constant 0 : i32
    %c0_i32_0 = arith.constant 0 : i32
    %c0_i32_1 = arith.constant 0 : i32
    return %c0_i32, %c0_i32_0 : i32, i32
  }
  func.func @transform_2(%arg0: i32) -> (i32, i32) {
    %c0_i32 = arith.constant 0 : i32
    %c0_i32_0 = arith.constant 0 : i32
    %c0_i32_1 = arith.constant 0 : i32
    return %c0_i32, %c0_i32_0 : i32, i32
  }
  func.func @transform_3(%arg0: i32) -> (i32, i32, i32) {
    %c0_i32 = arith.constant 0 : i32
    %c0_i32_0 = arith.constant 0 : i32
    %c0_i32_1 = arith.constant 0 : i32
    return %arg0, %c0_i32, %c0_i32_0 : i32, i32, i32
  }
}

</mosaic_0001>

<llo_original>
// kernel: pointnav_policy_forward.1
$region0: #{pointnav_policy_forward.1}
  #allocation0 [shape = 'u32[]', space=smem, size = 0x4, offset = 0x4, fixed_abs, tag = 'smem constant byte address 0x4 - core index']
  #allocation1 [shape = 'u32[144,128]{1,0:T(1,128)}', space=vmem, size = 0x12000, scoped, tag = 'internal scratch']
  #allocation2 [shape = 'f32[8,128]{1,0:T(8,128)}', space=vmem, size = 0x1000, scoped, tag = 'scratch operand']
  %s0 = inlined_call_operand.vmem [shape: f32[8,8,128], index: 0, kind: input, shape index: {}]
  %s1 = inlined_call_operand.vmem [shape: f32[8,128], index: 1, kind: input, shape index: {}]
  %s2 = inlined_call_operand.vmem [shape: f32[128,384], index: 2, kind: input, shape index: {}]
  %s3 = inlined_call_operand.vmem [shape: f32[8,8,128], index: 3, kind: output, shape index: {}]
  %s4 = sld [smem:[#allocation0]]
  $region49: #{pointnav_policy_forward.1} parent=0
    _
  %s6 = ssub.s32 1, %s4
  %s7 = scalar_select 0, %s6, %s4
  loop: start=0, step=1, limit=10
  $region2: #{pointnav_policy_forward.1} parent=0 // loop_pre_header
    _
  $region3: #{pointnav_policy_forward.1} parent=0 // loop_header
    %s9 = sphi 0, %s13
    %p10 = scmp.ge.s32.totalorder %s9, 10
    %s19 = sphi 0, %s21
    %s22 = sphi 0, %s19
    %s23 = sphi 0, %s22
    %s39 = sphi 0, %s23
    %s43 = sphi 0, %s43
    %s45 = sphi 0, %s43
    %s46 = sphi 0, %s45
    %s60 = sphi 0, %s46
    %s64 = sphi 0, %s64
    %s66 = sphi 0, %s64
    %s67 = sphi 0, %s66
    %s81 = sphi 0, %s67
    %s87 = sphi 0, %s89
    %s90 = sphi 0, %s87
    %s91 = sphi 0, %s90
    %s107 = sphi 0, %s91
  $region4: #{pointnav_policy_forward.1} parent=0 // loop_header_branch
    %12 = sbr.rel (%p10) target = $region8
  $region5: #{pointnav_policy_forward.1} parent=0 // loop_body
    %s14 = ssub.s32 %s9, 1
    %s15 = ssub.s32 %s9, 2
    %s16 = sadd.s32 %s9, 1
    %s17 = ssub.s32 %s9, %s16
    %p18 = scmp.eq.s32.totalorder %s17, 0
    %s20 = sadd.s32 %s19, 1
    %s21 = scalar_select %p18, %s19, %s20
    %p24 = pneg %p18
    %p25 = scmp.eq.s32.totalorder %s9, 7
    %p26 = por %p24, %p25
    %p27 = scmp.ne.s32.totalorder %s19, %s22
    %p28 = scmp.eq.s32.totalorder %s9, 0
    %p29 = por %p27, %p28
    %p30 = scmp.ne.s32.totalorder %s19, %s22
    %p31 = scmp.eq.s32.totalorder %s14, 7
    %p32 = por %p30, %p31
    %p33 = scmp.ne.s32.totalorder %s22, %s23
    %p34 = scmp.eq.s32.totalorder %s14, 0
    %p35 = por %p33, %p34
    %p36 = scmp.ne.s32.totalorder %s22, %s23
    %p37 = scmp.eq.s32.totalorder %s15, 7
    %p38 = por %p36, %p37
    %p40 = scmp.ne.s32.totalorder %s23, %s39
    %p41 = scmp.eq.s32.totalorder %s15, 0
    %p42 = por %p40, %p41
    %s44 = sadd.s32 %s43, 1
    %p47 = scmp.eq.s32.totalorder %s9, 7
    %p48 = scmp.ne.s32.totalorder %s43, %s45
    %p49 = scmp.eq.s32.totalorder %s9, 0
    %p50 = por %p48, %p49
    %p51 = scmp.ne.s32.totalorder %s43, %s45
    %p52 = scmp.eq.s32.totalorder %s14, 7
    %p53 = por %p51, %p52
    %p54 = scmp.ne.s32.totalorder %s45, %s46
    %p55 = scmp.eq.s32.totalorder %s14, 0
    %p56 = por %p54, %p55
    %p57 = scmp.ne.s32.totalorder %s45, %s46
    %p58 = scmp.eq.s32.totalorder %s15, 7
    %p59 = por %p57, %p58
    %p61 = scmp.ne.s32.totalorder %s46, %s60
    %p62 = scmp.eq.s32.totalorder %s15, 0
    %p63 = por %p61, %p62
    %s65 = sadd.s32 %s64, 1
    %p68 = scmp.eq.s32.totalorder %s9, 7
    %p69 = scmp.ne.s32.totalorder %s64, %s66
    %p70 = scmp.eq.s32.totalorder %s9, 0
    %p71 = por %p69, %p70
    %p72 = scmp.ne.s32.totalorder %s64, %s66
    %p73 = scmp.eq.s32.totalorder %s14, 7
    %p74 = por %p72, %p73
    %p75 = scmp.ne.s32.totalorder %s66, %s67
    %p76 = scmp.eq.s32.totalorder %s14, 0
    %p77 = por %p75, %p76
    %p78 = scmp.ne.s32.totalorder %s66, %s67
    %p79 = scmp.eq.s32.totalorder %s15, 7
    %p80 = por %p78, %p79
    %p82 = scmp.ne.s32.totalorder %s67, %s81
    %p83 = scmp.eq.s32.totalorder %s15, 0
    %p84 = por %p82, %p83
    %s85 = ssub.s32 %s9, %s16
    %p86 = scmp.eq.s32.totalorder %s85, 0
    %s88 = sadd.s32 %s87, 1
    %s89 = scalar_select %p86, %s87, %s88
    %p92 = pneg %p86
    %p93 = scmp.eq.s32.totalorder %s9, 7
    %p94 = por %p92, %p93
    %p95 = scmp.ne.s32.totalorder %s87, %s90
    %p96 = scmp.eq.s32.totalorder %s9, 0
    %p97 = por %p95, %p96
    %p98 = scmp.ne.s32.totalorder %s87, %s90
    %p99 = scmp.eq.s32.totalorder %s14, 7
    %p100 = por %p98, %p99
    %p101 = scmp.ne.s32.totalorder %s90, %s91
    %p102 = scmp.eq.s32.totalorder %s14, 0
    %p103 = por %p101, %p102
    %p104 = scmp.ne.s32.totalorder %s90, %s91
    %p105 = scmp.eq.s32.totalorder %s15, 7
    %p106 = por %p104, %p105
    %p108 = scmp.ne.s32.totalorder %s91, %s107
    %p109 = scmp.eq.s32.totalorder %s15, 0
    %p110 = por %p108, %p109
    %p111 = scmp.le.s32.totalorder 1, %s9
    %p112 = scmp.lt.s32.totalorder %s9, 9
    %p113 = pnand %p111, %p112
    %p114 = pneg %p113
    // Predicated region
    $region9: #{pointnav_policy_forward.1} parent=5 // pred_check
      _
    $region10: #{pointnav_policy_forward.1} parent=5 // pred_check_branch
      %116 = sbr.rel (%p113) target = $region12
    $region11: #{pointnav_policy_forward.1} parent=5 // pred_region
      %s117 = ssub.s32 %s9, 1
      // Predicated region
      $region13: #{pointnav_policy_forward.1} parent=11 // pred_check
        %p118 = pneg %p56
      $region14: #{pointnav_policy_forward.1} parent=11 // pred_check_branch
        %120 = sbr.rel (%p118) target = $region16
      $region15: #{pointnav_policy_forward.1} parent=11 // pred_region
        _
      $region16: #{pointnav_policy_forward.1} parent=11 // pred_fallthru
        _
      // Predicated region
      $region17: #{pointnav_policy_forward.1} parent=11 // pred_check
        %p121 = pneg %p77
      $region18: #{pointnav_policy_forward.1} parent=11 // pred_check_branch
        %123 = sbr.rel (%p121) target = $region20
      $region19: #{pointnav_policy_forward.1} parent=11 // pred_region
        _
      $region20: #{pointnav_policy_forward.1} parent=11 // pred_fallthru
        _
    $region12: #{pointnav_policy_forward.1} parent=5 // pred_fallthru
      _
    %p124 = scmp.lt.s32.totalorder %s9, 8
    // Predicated region
    $region21: #{pointnav_policy_forward.1} parent=5 // pred_check
      %p125 = pneg %p124
    $region22: #{pointnav_policy_forward.1} parent=5 // pred_check_branch
      %127 = sbr.rel (%p125) target = $region24
    $region23: #{pointnav_policy_forward.1} parent=5 // pred_region
      // Predicated region
      $region25: #{pointnav_policy_forward.1} parent=23 // pred_check
        %p128 = pneg %p29
      $region26: #{pointnav_policy_forward.1} parent=23 // pred_check_branch
        %130 = sbr.rel (%p128) target = $region28
      $region27: #{pointnav_policy_forward.1} parent=23 // pred_region
        %p131 = scmp.lt.s32.totalorder %s9, 7
        %s132 = scalar_select %p131, %s9, 7
        %s133 = smul.addr %s132, 8
        %s134 = scalar_lea.vmem %s0, %s133
      $region28: #{pointnav_policy_forward.1} parent=23 // pred_fallthru
        _
    $region24: #{pointnav_policy_forward.1} parent=5 // pred_fallthru
      _
    %p135 = scmp.le.s32.totalorder 1, %s9
    %p136 = scmp.lt.s32.totalorder %s9, 9
    %p137 = pnand %p135, %p136
    %p138 = pneg %p137
    // Predicated region
    $region29: #{pointnav_policy_forward.1} parent=5 // pred_check
      _
    $region30: #{pointnav_policy_forward.1} parent=5 // pred_check_branch
      %140 = sbr.rel (%p137) target = $region32
    $region31: #{pointnav_policy_forward.1} parent=5 // pred_region
      %s141 = ssub.s32 %s9, 1
      %p142 = scmp.lt.s32.totalorder %s14, 7
      %s143 = scalar_select %p142, %s14, 7
      %s144 = smul.addr %s143, 8
      %s145 = scalar_lea.vmem %s0, %s144
      %p146 = pneg %p35
      %p147 = pneg %p32
      %p148 = pneg %p56
      %p149 = pneg %p53
      %p150 = pneg %p77
      %p151 = pneg %p74
      %p152 = pneg %p103
      %p153 = pneg %p100
      %p154 = scmp.lt.s32.totalorder %s14, 7
      %s155 = scalar_select %p154, %s14, 7
      %s156 = smul.addr %s155, 8
      %s157 = scalar_lea.vmem %s3, %s156
      %p158 = scmp.lt.s32.totalorder %s14, 7
      %s159 = scalar_select %p158, %s14, 7
      %s160 = smul.addr %s159, 8
      %s161 = scalar_lea.vmem %s0, %s160
      %p162 = scmp.lt.s32.totalorder %s14, 7
      %s163 = scalar_select %p162, %s14, 7
      %s164 = smul.addr %s163, 8
      %s165 = scalar_lea.vmem %s3, %s164
      %p166 = scmp.eq.s32.totalorder %s14, 0
      // Predicated region
      $region33: #{pointnav_policy_forward.1} parent=31 // pred_check
        %p167 = pneg %p166
      $region34: #{pointnav_policy_forward.1} parent=31 // pred_check_branch
        %169 = sbr.rel (%p167) target = $region36
      $region35: #{pointnav_policy_forward.1} parent=31 // pred_region
        %v170 = vld [vmem:[%s1] sm:$0xff]
        %171 = vst [vmem:[#allocation2] sm:$0xff] %v170
      $region36: #{pointnav_policy_forward.1} parent=31 // pred_fallthru
        _
      %v172 = vld [vmem:[%s161] sm:$0xff]
      %v173 = vsub.f32 0.0, %v172
      %v174 = vand.u32 2147483647, %v173
      %vm175 = vcmp.le.f32.partialorder %v174, 0.7853982
      %vm176 = vcmp.lt.s32.totalorder %v173, 0
      %v177 = vand.u32 %v173, 2139095040
      %v178 = vshrl.u32 %v177, 23
      %v179 = vsub.s32 %v178, 127
      %v180 = vand.u32 2147483647, %v173
      %v181 = vand.u32 %v180, 8388607
      %v182 = vor.u32 %v181, 8388608
      %v183 = vsub.s32 0, %v182
      %v184 = vadd.s32 %v179, 1
      %vm185 = vcmp.gt.s32.totalorder %v184, 0
      %v186 = vsel %vm185, %v184, 0
      %v187 = vshrl.u32 %v186, 5
      %v188 = vand.u32 %v186, 31
      %v189 = vsub.s32 32, %v188
      %v190 = vshrl.u32 683565275, %v189
      %v191 = vshll.u32 683565275, %v188
      %v192 = vshrl.u32 2475754826, %v189
      %v193 = vor.u32 %v191, %v192
      %v194 = vshll.u32 2475754826, %v188
      %v195 = vshrl.u32 2131351028, %v189
      %v196 = vor.u32 %v194, %v195
      %v197 = vshll.u32 2131351028, %v188
      %v198 = vshrl.u32 2102212464, %v189
      %v199 = vor.u32 %v197, %v198
      %v200 = vshll.u32 2102212464, %v188
      %v201 = vshrl.u32 920167782, %v189
      %v202 = vor.u32 %v200, %v201
      %v203 = vshll.u32 920167782, %v188
      %v204 = vshrl.u32 1326507024, %v189
      %v205 = vor.u32 %v203, %v204
      %vm206 = vcmp.lt.s32.totalorder %v187, 1
      %vm207 = vcmp.lt.s32.totalorder %v187, 2
      %vm208 = vcmp.lt.s32.totalorder %v187, 3
      %vm209 = vcmp.lt.s32.totalorder %v187, 4
      %v210 = vsel %vm206, %v190, %v193
      %v211 = vsel %vm209, %v199, 2102212464
      %v212 = vsel %vm208, %v196, %v211
      %v213 = vsel %vm207, %v210, %v212
      %v214 = vsel %vm206, %v193, %v196
      %v215 = vsel %vm209, %v202, 920167782
      %v216 = vsel %vm208, %v199, %v215
      %v217 = vsel %vm207, %v214, %v216
      %v218 = vsel %vm206, %v196, %v199
      %v219 = vsel %vm209, %v205, 1326507024
      %v220 = vsel %vm208, %v202, %v219
      %v221 = vsel %vm207, %v218, %v220
      %v222 = vshll.u32 %v182, 8
      %v223 = vmul.u32.u64.compose %v222, %v221
      %v224 = vextract.low.u32 %v223
      %v225 = vextract.high.u32 %v223
      %v226 = vmul.u32.u64.compose %v222, %v217
      %v227 = vextract.low.u32 %v226
      %v228 = vextract.high.u32 %v226
      %v229 = vmul.u32 %v222, %v213
      %v230 = vadd.s32 %v225, %v227
      %vm231 = vc.u32 %v225, %v227
      %v232 = vadd.s32 %v228, 1
      %v233 = vsel %vm231, %v232, %v228
      %v234 = vadd.s32 %v229, %v233
      %v235 = vadd.s32 %v234, 536870912
      %v236 = vshrl.u32 %v235, 30
      %v237 = vshll.u32 %v236, 30
      %v238 = vsub.s32 %v234, %v237
      %vm239 = vcmp.lt.s32.totalorder %v238, 0
      %v240 = vsub.s32 0, %v238
      %v241 = vsel %vm239, %v240, %v238
      %v242 = vclz %v241
      %v243 = vsub.s32 %v242, 2
      %vm244 = vcmp.gt.s32.totalorder 0, %v243
      %v245 = vsel %vm244, 0, %v243
      %v246 = vsub.s32 32, %v245
      %v247 = vshll.u32 %v238, %v245
      %v248 = vshrl.u32 %v230, %v246
      %v249 = vor.u32 %v247, %v248
      %v250 = vsub.s32 4294967266, %v245
      %v251 = vadd.s32 %v250, 127
      %v252 = vshll.u32 %v251, 23
      %v253 = vor.u32 4788187, %v252
      %v254 = vand.u32 2147483647, %v253
      %v256 = vcvt.s32.f32 %v249
      %v257 = vmul.f32 %v256, %v254
      %v258 = vxor.u32 %v257, 2147483648
      %v259 = vsel %vm176, %v258, %v257
      %v260 = vsub.s32 4, %v236
      %v261 = vsel %vm176, %v260, %v236
      %v262 = vsel %vm175, %v173, %v259
      %v263 = vsel %vm175, 0, %v261
      %v264 = vcosq.f32.pop %v262
      %v265 = vsinq.f32.pop %v262
      %vm266 = vweird.f32 %v173
      %v267 = vand.u32 %v263, 3
      %vm268 = vcmp.lt.s32.totalorder %v267, 2
      %vm269 = vcmp.eq.s32.totalorder %v267, 0
      %v270 = vxor.u32 %v265, 2147483648
      %v271 = vsel %vm269, %v264, %v270
      %vm272 = vcmp.eq.s32.totalorder %v267, 2
      %v273 = vxor.u32 %v264, 2147483648
      %v274 = vsel %vm272, %v273, %v265
      %v275 = vsel %vm268, %v271, %v274
      %v276 = vsel %vm266, nan, %v275
      %v277 = vand.u32 2147483647, %v173
      %vm278 = vcmp.le.f32.partialorder %v277, 0.7853982
      %vm279 = vcmp.lt.s32.totalorder %v173, 0
      %v280 = vand.u32 %v173, 2139095040
      %v281 = vshrl.u32 %v280, 23
      %v282 = vsub.s32 %v281, 127
      %v283 = vand.u32 2147483647, %v173
      %v284 = vand.u32 %v283, 8388607
      %v285 = vor.u32 %v284, 8388608
      %v286 = vsub.s32 0, %v285
      %v287 = vadd.s32 %v282, 1
      %vm288 = vcmp.gt.s32.totalorder %v287, 0
      %v289 = vsel %vm288, %v287, 0
      %v290 = vshrl.u32 %v289, 5
      %v291 = vand.u32 %v289, 31
      %v292 = vsub.s32 32, %v291
      %v293 = vshrl.u32 683565275, %v292
      %v294 = vshll.u32 683565275, %v291
      %v295 = vshrl.u32 2475754826, %v292
      %v296 = vor.u32 %v294, %v295
      %v297 = vshll.u32 2475754826, %v291
      %v298 = vshrl.u32 2131351028, %v292
      %v299 = vor.u32 %v297, %v298
      %v300 = vshll.u32 2131351028, %v291
      %v301 = vshrl.u32 2102212464, %v292
      %v302 = vor.u32 %v300, %v301
      %v303 = vshll.u32 2102212464, %v291
      %v304 = vshrl.u32 920167782, %v292
      %v305 = vor.u32 %v303, %v304
      %v306 = vshll.u32 920167782, %v291
      %v307 = vshrl.u32 1326507024, %v292
      %v308 = vor.u32 %v306, %v307
      %vm309 = vcmp.lt.s32.totalorder %v290, 1
      %vm310 = vcmp.lt.s32.totalorder %v290, 2
      %vm311 = vcmp.lt.s32.totalorder %v290, 3
      %vm312 = vcmp.lt.s32.totalorder %v290, 4
      %v313 = vsel %vm309, %v293, %v296
      %v314 = vsel %vm312, %v302, 2102212464
      %v315 = vsel %vm311, %v299, %v314
      %v316 = vsel %vm310, %v313, %v315
      %v317 = vsel %vm309, %v296, %v299
      %v318 = vsel %vm312, %v305, 920167782
      %v319 = vsel %vm311, %v302, %v318
      %v320 = vsel %vm310, %v317, %v319
      %v321 = vsel %vm309, %v299, %v302
      %v322 = vsel %vm312, %v308, 1326507024
      %v323 = vsel %vm311, %v305, %v322
      %v324 = vsel %vm310, %v321, %v323
      %v325 = vshll.u32 %v285, 8
      %v326 = vmul.u32.u64.compose %v325, %v324
      %v327 = vextract.low.u32 %v326
      %v328 = vextract.high.u32 %v326
      %v329 = vmul.u32.u64.compose %v325, %v320
      %v330 = vextract.low.u32 %v329
      %v331 = vextract.high.u32 %v329
      %v332 = vmul.u32 %v325, %v316
      %v333 = vadd.s32 %v328, %v330
      %vm334 = vc.u32 %v328, %v330
      %v335 = vadd.s32 %v331, 1
      %v336 = vsel %vm334, %v335, %v331
      %v337 = vadd.s32 %v332, %v336
      %v338 = vadd.s32 %v337, 536870912
      %v339 = vshrl.u32 %v338, 30
      %v340 = vshll.u32 %v339, 30
      %v341 = vsub.s32 %v337, %v340
      %vm342 = vcmp.lt.s32.totalorder %v341, 0
      %v343 = vsub.s32 0, %v341
      %v344 = vsel %vm342, %v343, %v341
      %v345 = vclz %v344
      %v346 = vsub.s32 %v345, 2
      %vm347 = vcmp.gt.s32.totalorder 0, %v346
      %v348 = vsel %vm347, 0, %v346
      %v349 = vsub.s32 32, %v348
      %v350 = vshll.u32 %v341, %v348
      %v351 = vshrl.u32 %v333, %v349
      %v352 = vor.u32 %v350, %v351
      %v353 = vsub.s32 4294967266, %v348
      %v354 = vadd.s32 %v353, 127
      %v355 = vshll.u32 %v354, 23
      %v356 = vor.u32 4788187, %v355
      %v357 = vand.u32 2147483647, %v356
      %v359 = vcvt.s32.f32 %v352
      %v360 = vmul.f32 %v359, %v357
      %v361 = vxor.u32 %v360, 2147483648
      %v362 = vsel %vm279, %v361, %v360
      %v363 = vsub.s32 4, %v339
      %v364 = vsel %vm279, %v363, %v339
      %v365 = vsel %vm278, %v173, %v362
      %v366 = vsel %vm278, 0, %v364
      %v367 = vcosq.f32.pop %v365
      %v368 = vsinq.f32.pop %v365
      %vm369 = vweird.f32 %v173
      %v370 = vadd.s32 %v366, 3
      %v371 = vand.u32 %v370, 3
      %vm372 = vcmp.lt.s32.totalorder %v371, 2
      %vm373 = vcmp.eq.s32.totalorder %v371, 0
      %v374 = vxor.u32 %v368, 2147483648
      %v375 = vsel %vm373, %v367, %v374
      %vm376 = vcmp.eq.s32.totalorder %v371, 2
      %v377 = vxor.u32 %v367, 2147483648
      %v378 = vsel %vm376, %v377, %v368
      %v379 = vsel %vm372, %v375, %v378
      %v380 = vsel %vm369, nan, %v379
      %382 = vrot.lane.b32.xlu0 %v172, 124
      %v383 = vpop.permute.xlu0 %382
      %v385 = vadd.f32 %v172, %v383
      %v386 = vmax.f32 %v385, 0.0
      %v387 = vmul.f32 %v172, 0.1
      %389 = vrot.lane.b32.xlu0 %v387, 124
      %v390 = vpop.permute.xlu0 %389
      %v392 = vadd.f32 %v276, %v390
      %v393 = vmax.f32 %v392, -1.0
      %v394 = vmin.f32 %v393, 1.0
      %395 = vrot.lane.b32.xlu0 %v387, 123
      %v396 = vpop.permute.xlu0 %395
      %v398 = vadd.f32 %v380, %v396
      %v399 = vmax.f32 %v398, -1.0
      %v400 = vmin.f32 %v399, 1.0
      %v401 = vlaneseq
      %v402 = vand.u32 %v401, 127
      %vm403 = vcmp.eq.s32.totalorder %v402, 32
      %vm404 = vcmp.eq.s32.totalorder %v402, 33
      %vm405 = vcmp.eq.s32.totalorder %v402, 34
      %vm406 = vcmp.eq.s32.totalorder %v402, 35
      %vm407 = vcmp.eq.s32.totalorder %v402, 36
      %vm408 = vcmp.eq.s32.totalorder %v402, 37
      %410 = vset.pattern.permute.xlu0 1
      %411 = vperm.xlu0 %410, %v380
      %v412 = vpop.permute.xlu0 %411
      %v414 = vsel %vm408, %v412, 0.0
      %416 = vset.pattern.permute.xlu0 1
      %417 = vperm.xlu0 %416, %v276
      %v418 = vpop.permute.xlu0 %417
      %v420 = vsel %vm407, %v418, %v414
      %421 = vset.pattern.permute.xlu0 0
      %422 = vperm.xlu0 %421, %v172
      %v423 = vpop.permute.xlu0 %422
      %v425 = vsel %vm406, %v423, %v420
      %427 = vset.pattern.permute.xlu0 1
      %428 = vperm.xlu0 %427, %v400
      %v429 = vpop.permute.xlu0 %428
      %v431 = vsel %vm405, %v429, %v425
      %433 = vset.pattern.permute.xlu0 1
      %434 = vperm.xlu0 %433, %v394
      %v435 = vpop.permute.xlu0 %434
      %v437 = vsel %vm404, %v435, %v431
      %439 = vset.pattern.permute.xlu0 0
      %440 = vperm.xlu0 %439, %v386
      %v441 = vpop.permute.xlu0 %440
      %v443 = vsel %vm403, %v441, %v437
      %vm444 = vcmp.gt.f32.partialorder %v172, 0.5
      %v445 = vadd.f32 %v172, 1.0
      %447 = vrot.lane.b32.xlu0 %v445, 127
      %v448 = vpop.permute.xlu0 %447
      %v450 = vsel %vm444, %v448, 0.0
      %v451 = vcvt.s32.f32 %v402
      %v452 = vadd.f32 %v450, 38.0
      %454 = vset.pattern.permute.xlu0 2
      %455 = vperm.xlu0 %454, %v452
      %v456 = vpop.permute.xlu0 %455
      %vm458 = vcmp.eq.f32.partialorder %v451, %v456
      %vm459 = vcmp.eq.s32.totalorder %v402, 43
      %vm460 = vmor %vm458, %vm459
      %v461 = vsel %vm460, 1.0, %v443
      %v462 = vld [vmem:[#allocation2] sm:$0xff]
      %463 = vset.pattern.permute.xlu0 2
      %464 = vperm.xlu0 %463, %v172
      %v465 = vpop.permute.xlu0 %464
      %v467 = vmul.f32 %v462, %v465
      %v468 = vadd.f32 %v461, %v467
      %v469 = vld [vmem:[%s2] sm:$0xff]
      %v470 = vld [vmem:[%s2 + $0x8] sm:$0xff]
      %v471 = vld [vmem:[%s2 + $0x18] sm:$0xff]
      %v472 = vld [vmem:[%s2 + $0x20] sm:$0xff]
      %v473 = vld [vmem:[%s2 + $0x30] sm:$0xff]
      %v474 = vld [vmem:[%s2 + $0x38] sm:$0xff]
      %v475 = vld [vmem:[%s2 + $0x48] sm:$0xff]
      %v476 = vld [vmem:[%s2 + $0x50] sm:$0xff]
      %v477 = vld [vmem:[%s2 + $0x60] sm:$0xff]
      %v478 = vld [vmem:[%s2 + $0x68] sm:$0xff]
      %v479 = vld [vmem:[%s2 + $0x78] sm:$0xff]
      %v480 = vld [vmem:[%s2 + $0x80] sm:$0xff]
      %v481 = vld [vmem:[%s2 + $0x90] sm:$0xff]
      %v482 = vld [vmem:[%s2 + $0x98] sm:$0xff]
      %v483 = vld [vmem:[%s2 + $0xa8] sm:$0xff]
      %v484 = vld [vmem:[%s2 + $0xb0] sm:$0xff]
      %v485 = vld [vmem:[%s2 + $0xc0] sm:$0xff]
      %v486 = vld [vmem:[%s2 + $0xc8] sm:$0xff]
      %v487 = vld [vmem:[%s2 + $0xd8] sm:$0xff]
      %v488 = vld [vmem:[%s2 + $0xe0] sm:$0xff]
      %v489 = vld [vmem:[%s2 + $0xf0] sm:$0xff]
      %v490 = vld [vmem:[%s2 + $0xf8] sm:$0xff]
      %v491 = vld [vmem:[%s2 + $0x108] sm:$0xff]
      %v492 = vld [vmem:[%s2 + $0x110] sm:$0xff]
      %v493 = vld [vmem:[%s2 + $0x120] sm:$0xff]
      %v494 = vld [vmem:[%s2 + $0x128] sm:$0xff]
      %v495 = vld [vmem:[%s2 + $0x138] sm:$0xff]
      %v496 = vld [vmem:[%s2 + $0x140] sm:$0xff]
      %v497 = vld [vmem:[%s2 + $0x150] sm:$0xff]
      %v498 = vld [vmem:[%s2 + $0x158] sm:$0xff]
      %v499 = vld [vmem:[%s2 + $0x168] sm:$0xff]
      %v500 = vld [vmem:[%s2 + $0x170] sm:$0xff]
      %v501 = vld [vmem:[%s2 + $0x10] sm:$0xff]
      %v502 = vld [vmem:[%s2 + $0x28] sm:$0xff]
      %v503 = vld [vmem:[%s2 + $0x40] sm:$0xff]
      %v504 = vld [vmem:[%s2 + $0x58] sm:$0xff]
      %v505 = vld [vmem:[%s2 + $0x70] sm:$0xff]
      %v506 = vld [vmem:[%s2 + $0x88] sm:$0xff]
      %v507 = vld [vmem:[%s2 + $0xa0] sm:$0xff]
      %v508 = vld [vmem:[%s2 + $0xb8] sm:$0xff]
      %v509 = vld [vmem:[%s2 + $0xd0] sm:$0xff]
      %v510 = vld [vmem:[%s2 + $0xe8] sm:$0xff]
      %v511 = vld [vmem:[%s2 + $0x100] sm:$0xff]
      %v512 = vld [vmem:[%s2 + $0x118] sm:$0xff]
      %v513 = vld [vmem:[%s2 + $0x130] sm:$0xff]
      %v514 = vld [vmem:[%s2 + $0x148] sm:$0xff]
      %v515 = vld [vmem:[%s2 + $0x160] sm:$0xff]
      %v516 = vld [vmem:[%s2 + $0x178] sm:$0xff]
      %517 = vmatprep.subr.mxu0 %v470
      %518 = vmatpush1.msra.mxu0 %v469
      %519 = vmatprep.subr.mxu0 %v472
      %520 = vmatpush1.msra.mxu0 %v471
      %521 = vmatprep.subr.mxu0 %v474
      %522 = vmatpush1.msra.mxu0 %v473
      %523 = vmatprep.subr.mxu0 %v476
      %524 = vmatpush1.msra.mxu0 %v475
      %525 = vmatprep.subr.mxu0 %v478
      %526 = vmatpush1.msra.mxu0 %v477
      %527 = vmatprep.subr.mxu0 %v480
      %528 = vmatpush1.msra.mxu0 %v479
      %529 = vmatprep.subr.mxu0 %v482
      %530 = vmatpush1.msra.mxu0 %v481
      %531 = vmatprep.subr.mxu0 %v484
      %532 = vmatpush1.msra.mxu0 %v483
      %533 = vmatprep.subr.mxu0 %v486
      %534 = vmatpush1.msra.mxu0 %v485
      %535 = vmatprep.subr.mxu0 %v488
      %536 = vmatpush1.msra.mxu0 %v487
      %537 = vmatprep.subr.mxu0 %v490
      %538 = vmatpush1.msra.mxu0 %v489
      %539 = vmatprep.subr.mxu0 %v492
      %540 = vmatpush1.msra.mxu0 %v491
      %541 = vmatprep.subr.mxu0 %v494
      %542 = vmatpush1.msra.mxu0 %v493
      %543 = vmatprep.subr.mxu0 %v496
      %544 = vmatpush1.msra.mxu0 %v495
      %545 = vmatprep.subr.mxu0 %v498
      %546 = vmatpush1.msra.mxu0 %v497
      %547 = vmatprep.subr.mxu0 %v500
      %548 = vmatpush1.msra.mxu0 %v499
      %549 = vmatprep.subr.mxu0 0.0
      %550 = vmatpush1.msra.mxu0 0.0
      %551 = vmatprep.subr.mxu0 0.0
      %552 = vmatpush1.msra.mxu0 0.0
      %553 = vmatprep.subr.mxu0 0.0
      %554 = vmatpush1.msra.mxu0 0.0
      %555 = vmatprep.subr.mxu0 0.0
      %556 = vmatpush1.msra.mxu0 0.0
      %557 = vmatprep.subr.mxu0 0.0
      %558 = vmatpush1.msra.mxu0 0.0
      %559 = vmatprep.subr.mxu0 0.0
      %560 = vmatpush1.msra.mxu0 0.0
      %561 = vmatprep.subr.mxu0 0.0
      %562 = vmatpush1.msra.mxu0 0.0
      %563 = vmatprep.subr.mxu0 0.0
      %564 = vmatpush1.msra.mxu0 0.0
      %565 = vmatprep.subr.mxu0 0.0
      %566 = vmatpush1.msra.mxu0 0.0
      %567 = vmatprep.subr.mxu0 0.0
      %568 = vmatpush1.msra.mxu0 0.0
      %569 = vmatprep.subr.mxu0 0.0
      %570 = vmatpush1.msra.mxu0 0.0
      %571 = vmatprep.subr.mxu0 0.0
      %572 = vmatpush1.msra.mxu0 0.0
      %573 = vmatprep.subr.mxu0 0.0
      %574 = vmatpush1.msra.mxu0 0.0
      %575 = vmatprep.subr.mxu0 0.0
      %576 = vmatpush1.msra.mxu0 0.0
      %577 = vmatprep.subr.mxu0 0.0
      %578 = vmatpush1.msra.mxu0 0.0
      %579 = vmatprep.subr.mxu0 0.0
      %580 = vmatpush1.msra.mxu0 0.0
      %581 = vmatprep.mubr.f32.mxu0 0.0
      %582 = vmatmul.mubr.f32.gmra.mrb[0].mxu0 %v468
      %v583 = vpop.f32.mrb[0].mxu0
      %v584 = vadd.f32 0.0, %v583
      %v585 = vpop.f32.mrb[0].mxu0
      %v586 = vadd.f32 0.0, %v585
      %587 = vdwg.mxu0
      %v588 = vadd.f32 %v584, %v586
      %v589 = vxor.u32 %v588, 2147483648
      %v590 = vmul.f32 %v589, 1.442695
      %v591 = vpow.pop %v590
      %v592 = vadd.f32 %v591, 1.0
      %v593 = vrcp.pop %v592
      %v594 = vmul.f32 1.0, %v593
      %596 = vrot.lane.b32.xlu0 %v586, 64
      %v597 = vpop.permute.xlu0 %596
      %v599 = vmul.f32 %v594, %v597
      %601 = vrot.lane.b32.xlu0 %v599, 64
      %v602 = vpop.permute.xlu0 %601
      %v604 = vadd.f32 %v584, %v602
      %v605 = vtanh.pop %v604
      %v606 = vsub.f32 1.0, %v594
      %608 = vrot.lane.b32.xlu0 %v605, 96
      %v609 = vpop.permute.xlu0 %608
      %v611 = vmul.f32 %v606, %v609
      %613 = vrot.lane.b32.xlu0 %v467, 32
      %v614 = vpop.permute.xlu0 %613
      %v616 = vmul.f32 %v594, %v614
      %v617 = vadd.f32 %v611, %v616
      %619 = vrot.lane.b32.xlu0 %v617, 96
      %v620 = vpop.permute.xlu0 %619
      %vm622 = vcmask 261120
      %623 = vst.msk [vmem:[#allocation2] sm:$0xff] %vm622, %v620
      %vm624 = vcmp.eq.s32.totalorder %v402, 0
      %v625 = vsel %vm624, 1, 0
      %v626 = vcvt.s32.f32 %v625
      %v627 = vmul.f32 %v617, 0.5
      %v628 = vmul.f32 %v617, 0.044715
      %v629 = vmul.f32 %v628, %v617
      %v630 = vmul.f32 %v629, %v617
      %v631 = vadd.f32 %v617, %v630
      %v632 = vmul.f32 %v631, 0.7978846
      %v633 = vtanh.pop %v632
      %v634 = vadd.f32 %v633, 1.0
      %v635 = vmul.f32 %v627, %v634
      %v636 = vmul.f32 %v584, 0.5
      %v637 = vmul.f32 %v584, 0.044715
      %v638 = vmul.f32 %v637, %v584
      %v639 = vmul.f32 %v638, %v584
      %v640 = vadd.f32 %v584, %v639
      %v641 = vmul.f32 %v640, 0.7978846
      %v642 = vtanh.pop %v641
      %v643 = vadd.f32 %v642, 1.0
      %v644 = vmul.f32 %v636, %v643
      %646 = vrot.lane.b32.xlu0 %v635, 96
      %v647 = vpop.permute.xlu0 %646
      %650 = vrot.lane.b32.xlu0 %v644, 64
      %v651 = vpop.permute.xlu0 %650
      %653 = vrot.lane.b32.xlu0 %v617, 32
      %v654 = vpop.permute.xlu0 %653
      %657 = vrot.lane.b32.xlu0 %v626, 96
      %v658 = vpop.permute.xlu0 %657
      %v660 = vsel %vm622, %v647, %v651
      %vm661 = vcmask 523264
      %v662 = vsel %vm661, %v660, %v654
      %vm663 = vcmask 785408
      %v664 = vsel %vm663, %v662, %v658
      %665 = vmatprep.subr.mxu0 0.0
      %666 = vmatpush1.msra.mxu0 %v501
      %667 = vmatprep.subr.mxu0 0.0
      %668 = vmatpush1.msra.mxu0 %v502
      %669 = vmatprep.subr.mxu0 0.0
      %670 = vmatpush1.msra.mxu0 %v503
      %671 = vmatprep.subr.mxu0 0.0
      %672 = vmatpush1.msra.mxu0 %v504
      %673 = vmatprep.subr.mxu0 0.0
      %674 = vmatpush1.msra.mxu0 %v505
      %675 = vmatprep.subr.mxu0 0.0
      %676 = vmatpush1.msra.mxu0 %v506
      %677 = vmatprep.subr.mxu0 0.0
      %678 = vmatpush1.msra.mxu0 %v507
      %679 = vmatprep.subr.mxu0 0.0
      %680 = vmatpush1.msra.mxu0 %v508
      %681 = vmatprep.subr.mxu0 0.0
      %682 = vmatpush1.msra.mxu0 %v509
      %683 = vmatprep.subr.mxu0 0.0
      %684 = vmatpush1.msra.mxu0 %v510
      %685 = vmatprep.subr.mxu0 0.0
      %686 = vmatpush1.msra.mxu0 %v511
      %687 = vmatprep.subr.mxu0 0.0
      %688 = vmatpush1.msra.mxu0 %v512
      %689 = vmatprep.subr.mxu0 0.0
      %690 = vmatpush1.msra.mxu0 %v513
      %691 = vmatprep.subr.mxu0 0.0
      %692 = vmatpush1.msra.mxu0 %v514
      %693 = vmatprep.subr.mxu0 0.0
      %694 = vmatpush1.msra.mxu0 %v515
      %695 = vmatprep.subr.mxu0 0.0
      %696 = vmatpush1.msra.mxu0 %v516
      %697 = vmatprep.subr.mxu0 0.0
      %698 = vmatpush1.msra.mxu0 0.0
      %699 = vmatprep.subr.mxu0 0.0
      %700 = vmatpush1.msra.mxu0 0.0
      %701 = vmatprep.subr.mxu0 0.0
      %702 = vmatpush1.msra.mxu0 0.0
      %703 = vmatprep.subr.mxu0 0.0
      %704 = vmatpush1.msra.mxu0 0.0
      %705 = vmatprep.subr.mxu0 0.0
      %706 = vmatpush1.msra.mxu0 0.0
      %707 = vmatprep.subr.mxu0 0.0
      %708 = vmatpush1.msra.mxu0 0.0
      %709 = vmatprep.subr.mxu0 0.0
      %710 = vmatpush1.msra.mxu0 0.0
      %711 = vmatprep.subr.mxu0 0.0
      %712 = vmatpush1.msra.mxu0 0.0
      %713 = vmatprep.subr.mxu0 0.0
      %714 = vmatpush1.msra.mxu0 0.0
      %715 = vmatprep.subr.mxu0 0.0
      %716 = vmatpush1.msra.mxu0 0.0
      %717 = vmatprep.subr.mxu0 0.0
      %718 = vmatpush1.msra.mxu0 0.0
      %719 = vmatprep.subr.mxu0 0.0
      %720 = vmatpush1.msra.mxu0 0.0
      %721 = vmatprep.subr.mxu0 0.0
      %722 = vmatpush1.msra.mxu0 0.0
      %723 = vmatprep.subr.mxu0 0.0
      %724 = vmatpush1.msra.mxu0 0.0
      %725 = vmatprep.subr.mxu0 0.0
      %726 = vmatpush1.msra.mxu0 0.0
      %727 = vmatprep.subr.mxu0 0.0
      %728 = vmatpush1.msra.mxu0 0.0
      %729 = vmatprep.mubr.f32.mxu0 0.0
      %730 = vmatmul.mubr.f32.gmra.mrb[0].mxu0 %v664
      %v731 = vpop.f32.mrb[0].mxu0
      %v732 = vadd.f32 0.0, %v731
      %v733 = vpop.f32.mrb[0].mxu0
      %734 = vdwg.mxu0
      %735 = vst [vmem:[%s165] sm:$0xff] %v732
      %p736 = scmp.lt.s32.totalorder %s14, 7
      %s737 = scalar_select %p736, %s14, 7
      %s738 = smul.addr %s737, 8
      %s739 = scalar_lea.vmem %s3, %s738
      // Predicated region
      $region37: #{pointnav_policy_forward.1} parent=31 // pred_check
        %p740 = pneg %p100
      $region38: #{pointnav_policy_forward.1} parent=31 // pred_check_branch
        %742 = sbr.rel (%p740) target = $region40
      $region39: #{pointnav_policy_forward.1} parent=31 // pred_region
        _
      $region40: #{pointnav_policy_forward.1} parent=31 // pred_fallthru
        _
    $region32: #{pointnav_policy_forward.1} parent=5 // pred_fallthru
      _
    %p743 = scmp.le.s32.totalorder 2, %s9
    // Predicated region
    $region41: #{pointnav_policy_forward.1} parent=5 // pred_check
      %p744 = pneg %p743
    $region42: #{pointnav_policy_forward.1} parent=5 // pred_check_branch
      %746 = sbr.rel (%p744) target = $region44
    $region43: #{pointnav_policy_forward.1} parent=5 // pred_region
      %s747 = ssub.s32 %s9, 2
      // Predicated region
      $region45: #{pointnav_policy_forward.1} parent=43 // pred_check
        %p748 = pneg %p106
      $region46: #{pointnav_policy_forward.1} parent=43 // pred_check_branch
        %750 = sbr.rel (%p748) target = $region48
      $region47: #{pointnav_policy_forward.1} parent=43 // pred_region
        %p751 = scmp.lt.s32.totalorder %s15, 7
        %s752 = scalar_select %p751, %s15, 7
        %s753 = smul.addr %s752, 8
        %s754 = scalar_lea.vmem %s3, %s753
      $region48: #{pointnav_policy_forward.1} parent=43 // pred_fallthru
        _
    $region44: #{pointnav_policy_forward.1} parent=5 // pred_fallthru
      _
  $region6: #{pointnav_policy_forward.1} parent=0 // loop_footer
    %s13 = sadd.s32 1, %s9
  $region7: #{pointnav_policy_forward.1} parent=0 // loop_footer_branch
    %8 = sbr.rel target = $region3
  $region8: #{pointnav_policy_forward.1} parent=0 // loop_exit
    _

</llo_original>
